<compile_context>
chip_gen: v6e
topology: v6e:2x2x1
jax: 0.10.0
libtpu: 0.0.40
codegen_flags: <defaults>
</compile_context>

<pallas_src>
import functools

import jax
import jax.numpy as jnp
import numpy as np
from jax.experimental import pallas as pl
from jax.experimental.pallas import tpu as pltpu

HIDDEN = 256
SUBLANE = 8


def _round_up(x, m):
    return (x + m - 1) // m * m


def _orthogonal(key, shape, gain):
    """Deterministic orthogonal init matching torch.nn.init.orthogonal_ semantics."""
    rows, cols = shape
    flat = jax.random.normal(key, (rows, cols), dtype=jnp.float32)
    if rows < cols:
        flat = flat.T
    q, r = jnp.linalg.qr(flat)
    d = jnp.sign(jnp.diag(r))
    q = q * d[None, :]
    if rows < cols:
        q = q.T
    return gain * q


def init_critic_params(obs_dim, key):
    """torch.nn.Linear layout: weight (out, in), bias (out,); biases zero."""
    k1, k2, k3 = jax.random.split(key, 3)
    std = float(np.sqrt(2.0))
    return dict(
        w1=_orthogonal(k1, (HIDDEN, obs_dim), std),   # core.0
        b1=jnp.zeros((HIDDEN,), jnp.float32),
        w2=_orthogonal(k2, (HIDDEN, HIDDEN), std),    # core.2
        b2=jnp.zeros((HIDDEN,), jnp.float32),
        w3=_orthogonal(k3, (1, HIDDEN), 1.0),         # critic.0 (std=1.0)
        b3=jnp.zeros((1,), jnp.float32),
    )


def prepare_critic_params(params, matmul_dtype=jnp.float32):
    """One-time conversion from torch layout to kernel layout.

    * weights transposed to (in, out) so the kernel computes y = x @ W + b
    * obs_dim (contraction K) zero-padded only up to a multiple of 8 sublanes
      (the obs tensor itself is never K-padded at call time)
    * matmul operands optionally cast to bf16 (v6e/v7x MXU fast path);
      biases and all accumulation stay f32.
    Do this once at init / outside the rollout loop, NOT per forward call.
    """
    obs_dim = params["w1"].shape[1]
    k_pad = _round_up(max(obs_dim, SUBLANE), SUBLANE)
    w1_t = jnp.zeros((k_pad, HIDDEN), jnp.float32).at[:obs_dim, :].set(params["w1"].T)
    return dict(
        w1=w1_t.astype(matmul_dtype),                             # (K_pad, 256)
        b1=params["b1"].reshape(1, HIDDEN).astype(jnp.float32),   # (1, 256)
        w2=params["w2"].T.astype(matmul_dtype),                   # (256, 256)
        b2=params["b2"].reshape(1, HIDDEN).astype(jnp.float32),   # (1, 256)
        w3=params["w3"].reshape(HIDDEN, 1).astype(matmul_dtype),  # (256, 1)
        b3=params["b3"].reshape(1).astype(jnp.float32),           # (1,)  SMEM
    )


def _critic_kernel(obs_ref, w1_ref, b1_ref, w2_ref, b2_ref, w3_ref, b3_ref,
                   out_ref):
    # obs_ref : (TILE_B, K)    VMEM (per-grid-step tile, double-buffered)
    # w1_ref  : (K, 256)       VMEM (resident across grid steps)
    # b1_ref  : (1, 256)       VMEM (resident)
    # w2_ref  : (256, 256)     VMEM (resident)
    # b2_ref  : (1, 256)       VMEM (resident)
    # w3_ref  : (256, 1)       VMEM (resident)
    # b3_ref  : (1,)           SMEM scalar
    # out_ref : (TILE_B, 1)    VMEM
    mm_dtype = w1_ref.dtype

    x = obs_ref[...].astype(mm_dtype)

    # core layer 1: Linear + Tanh (MXU, f32 accumulation; bias/tanh in f32)
    h1 = jnp.dot(x, w1_ref[...], preferred_element_type=jnp.float32)
    h1 = jnp.tanh(h1 + b1_ref[...])

    # core layer 2: Linear + Tanh
    h2 = jnp.dot(h1.astype(mm_dtype), w2_ref[...],
                 preferred_element_type=jnp.float32)
    h2 = jnp.tanh(h2 + b2_ref[...])

    # critic head: degenerate (256 -> 1) MXU matmul + scalar bias from SMEM
    v = jnp.dot(h2.astype(mm_dtype), w3_ref[...],
                preferred_element_type=jnp.float32)
    out_ref[...] = (v + b3_ref[0]).astype(out_ref.dtype)


@functools.partial(jax.jit, static_argnames=("tile_b",))
def critic_forward(obs, kparams, tile_b=512):
    """Pallas critic forward.  obs: (B, obs_dim) -> (B, 1) float32.

    kparams must come from prepare_critic_params().  tile_b (static) is the
    number of batch rows per grid step; it is shrunk automatically for small
    batches and for very wide observations so VMEM never overflows.
    """
    B, obs_dim = obs.shape
    w1 = kparams["w1"]
    k_pad = w1.shape[0]
    assert obs_dim <= k_pad, "obs_dim larger than prepared weights"

    # Batch tile: amortize per-step overhead, but cap the double-buffered obs
    # tile around 8 MiB so large obs_dim still fits v7x's 64 MiB VMEM.
    tile_b = max(SUBLANE, min(tile_b, _round_up(B, SUBLANE)))
    max_rows = max(SUBLANE, ((8 << 20) // (2 * 4 * k_pad)) // SUBLANE * SUBLANE)
    tile_b = min(tile_b, max_rows)
    b_pad = _round_up(B, tile_b)
    num_tiles = b_pad // tile_b

    # Zero-copy fast path when the batch already divides the tile and the
    # feature width matches the (sublane-aligned) prepared weights.
    if (b_pad != B) or (k_pad != obs_dim):
        obs_in = jnp.pad(obs.astype(jnp.float32),
                         ((0, b_pad - B), (0, k_pad - obs_dim)))
    else:
        obs_in = obs.astype(jnp.float32)

    # Explicit VMEM budget (resident weights + double-buffered obs/out tiles +
    # live f32 intermediates) with headroom, capped at v7x physical (64 MiB).
    w_item = jnp.dtype(w1.dtype).itemsize
    weights_bytes = (k_pad * HIDDEN + HIDDEN * HIDDEN + HIDDEN) * w_item \
        + 2 * HIDDEN * 4 + 64
    io_bytes = 2 * tile_b * k_pad * 4 + 2 * tile_b * 4
    inter_bytes = 4 * tile_b * HIDDEN * 4
    vmem_limit = min(2 * (weights_bytes + io_bytes + inter_bytes) + (16 << 20),
                     64 << 20)

    grid_spec = pltpu.PrefetchScalarGridSpec(
        num_scalar_prefetch=0,
        grid=(num_tiles,),
        in_specs=[
            pl.BlockSpec((tile_b, k_pad), lambda i: (i, 0)),    # obs tile
            pl.BlockSpec((k_pad, HIDDEN), lambda i: (0, 0)),    # w1 (resident)
            pl.BlockSpec((1, HIDDEN), lambda i: (0, 0)),        # b1 (resident)
            pl.BlockSpec((HIDDEN, HIDDEN), lambda i: (0, 0)),   # w2 (resident)
            pl.BlockSpec((1, HIDDEN), lambda i: (0, 0)),        # b2 (resident)
            pl.BlockSpec((HIDDEN, 1), lambda i: (0, 0)),        # w3 (resident)
            pl.BlockSpec(memory_space=pltpu.MemorySpace.SMEM),  # b3 scalar
        ],
        out_specs=pl.BlockSpec((tile_b, 1), lambda i: (i, 0)),
    )

    out = pl.pallas_call(
        _critic_kernel,
        out_shape=jax.ShapeDtypeStruct((b_pad, 1), jnp.float32),
        grid_spec=grid_spec,
        compiler_params=pltpu.CompilerParams(
            dimension_semantics=("parallel",),   # megacore-shard batch
            vmem_limit_bytes=int(vmem_limit),
        ),
    )(obs_in, w1, kparams["b1"], kparams["w2"], kparams["b2"], kparams["w3"],
      kparams["b3"])

    return out[:B]


def critic_forward_ref(obs, params):
    """Pure-JAX f32 reference (matches the PyTorch module)."""
    h1 = jnp.tanh(obs @ params["w1"].T + params["b1"])
    h2 = jnp.tanh(h1 @ params["w2"].T + params["b2"])
    return h2 @ params["w3"].T + params["b3"]


def critic_forward_ref_bf16(obs, params):
    """Pure-JAX reference emulating the bf16-MXU-operand / f32-accumulate path."""
    bf = jnp.bfloat16

    def mm(a, w):
        return jnp.dot(a.astype(bf), w.T.astype(bf),
                       preferred_element_type=jnp.float32)

    h1 = jnp.tanh(mm(obs, params["w1"]) + params["b1"])
    h2 = jnp.tanh(mm(h1, params["w2"]) + params["b2"])
    return mm(h2, params["w3"]) + params["b3"]


if __name__ == "__main__":
    key = jax.random.PRNGKey(0)
    k_obs, k_param = jax.random.split(key)

    B, obs_dim = 8, 32
    obs = jax.random.normal(k_obs, (B, obs_dim), dtype=jnp.float32)
    params = init_critic_params(obs_dim, k_param)

    # Full-f32 path: must match the PyTorch-equivalent reference tightly.
    kparams_f32 = prepare_critic_params(params, jnp.float32)
    out_f32 = jax.block_until_ready(critic_forward(obs, kparams_f32))
    ref_f32 = critic_forward_ref(obs, params)
    np.testing.assert_allclose(np.asarray(out_f32), np.asarray(ref_f32),
                               rtol=1e-5, atol=1e-5)
    assert out_f32.shape == (B, 1)

    # Odd batch / non-aligned case exercises the padded path.
    obs_odd = jax.random.normal(k_obs, (13, obs_dim), dtype=jnp.float32)
    out_odd = jax.block_until_ready(critic_forward(obs_odd, kparams_f32))
    ref_odd = critic_forward_ref(obs_odd, params)
    np.testing.assert_allclose(np.asarray(out_odd), np.asarray(ref_odd),
                               rtol=1e-5, atol=1e-5)
    assert out_odd.shape == (13, 1)

    # bf16-MXU-operand path (v6e/v7x fast path), checked against a matching
    # bf16-emulated reference with looser tolerance.
    kparams_bf16 = prepare_critic_params(params, jnp.bfloat16)
    out_bf16 = jax.block_until_ready(critic_forward(obs, kparams_bf16))
    ref_bf16 = critic_forward_ref_bf16(obs, params)
    np.testing.assert_allclose(np.asarray(out_bf16), np.asarray(ref_bf16),
                               rtol=5e-2, atol=5e-2)

    print("KERNEL_OK")
</pallas_src>

<mosaic_0001>
module attributes {stable_mosaic.version = 11 : i64} {
  func.func @_critic_kernel(%arg0: i32, %arg1: memref<8x32xf32, #tpu.memory_space<vmem>>, %arg2: memref<32x256xf32, #tpu.memory_space<vmem>>, %arg3: memref<1x256xf32, #tpu.memory_space<vmem>>, %arg4: memref<256x256xf32, #tpu.memory_space<vmem>>, %arg5: memref<1x256xf32, #tpu.memory_space<vmem>>, %arg6: memref<256x1xf32, #tpu.memory_space<vmem>>, %arg7: memref<1xf32, #tpu.memory_space<smem>>, %arg8: memref<8x1xf32, #tpu.memory_space<vmem>>) attributes {dimension_semantics = [#tpu.dimension_semantics<parallel>], iteration_bounds = array<i64: 1>, scalar_prefetch = 0 : i64, scratch_operands = 0 : i64, tpu.core_type = #tpu.core_type<tc>, window_params = [{transform_indices = @transform_0, window_bounds = array<i64: 8, 32>}, {pipeline_mode = #tpu.pipeline_mode<synchronous>, transform_indices = @transform_1, window_bounds = array<i64: 32, 256>}, {pipeline_mode = #tpu.pipeline_mode<synchronous>, transform_indices = @transform_2, window_bounds = array<i64: 1, 256>}, {pipeline_mode = #tpu.pipeline_mode<synchronous>, transform_indices = @transform_3, window_bounds = array<i64: 256, 256>}, {pipeline_mode = #tpu.pipeline_mode<synchronous>, transform_indices = @transform_4, window_bounds = array<i64: 1, 256>}, {pipeline_mode = #tpu.pipeline_mode<synchronous>, transform_indices = @transform_5, window_bounds = array<i64: 256, 1>}, {transform_indices = @transform_6, window_bounds = array<i64: 1>}, {transform_indices = @transform_7, window_bounds = array<i64: 8, 1>}]} {
    %c0 = arith.constant 0 : index
    %c0_0 = arith.constant 0 : index
    %0 = vector.load %arg1[%c0, %c0_0] : memref<8x32xf32, #tpu.memory_space<vmem>>, vector<8x32xf32>
    %c0_1 = arith.constant 0 : index
    %c0_2 = arith.constant 0 : index
    %1 = vector.load %arg2[%c0_1, %c0_2] : memref<32x256xf32, #tpu.memory_space<vmem>>, vector<32x256xf32>
    %cst = arith.constant dense<0.000000e+00> : vector<8x256xf32>
    %2 = tpu.matmul %0, %1, %cst {dimension_numbers = #tpu.dot_dimension_numbers<[1], [0], [0], [1], [0, 0, 1, 1], [], []>} : vector<8x32xf32>, vector<32x256xf32>, vector<8x256xf32> -> vector<8x256xf32>
    %c0_3 = arith.constant 0 : index
    %c0_4 = arith.constant 0 : index
    %3 = vector.load %arg3[%c0_3, %c0_4] : memref<1x256xf32, #tpu.memory_space<vmem>>, vector<1x256xf32>
    %4 = vector.broadcast %3 : vector<1x256xf32> to vector<8x256xf32>
    %5 = arith.addf %2, %4 : vector<8x256xf32>
    %6 = math.tanh %5 : vector<8x256xf32>
    %c0_5 = arith.constant 0 : index
    %c0_6 = arith.constant 0 : index
    %7 = vector.load %arg4[%c0_5, %c0_6] : memref<256x256xf32, #tpu.memory_space<vmem>>, vector<256x256xf32>
    %cst_7 = arith.constant dense<0.000000e+00> : vector<8x256xf32>
    %8 = tpu.matmul %6, %7, %cst_7 {dimension_numbers = #tpu.dot_dimension_numbers<[1], [0], [0], [1], [0, 0, 1, 1], [], []>} : vector<8x256xf32>, vector<256x256xf32>, vector<8x256xf32> -> vector<8x256xf32>
    %c0_8 = arith.constant 0 : index
    %c0_9 = arith.constant 0 : index
    %9 = vector.load %arg5[%c0_8, %c0_9] : memref<1x256xf32, #tpu.memory_space<vmem>>, vector<1x256xf32>
    %10 = vector.broadcast %9 : vector<1x256xf32> to vector<8x256xf32>
    %11 = arith.addf %8, %10 : vector<8x256xf32>
    %12 = math.tanh %11 : vector<8x256xf32>
    %c0_10 = arith.constant 0 : index
    %c0_11 = arith.constant 0 : index
    %13 = vector.load %arg6[%c0_10, %c0_11] : memref<256x1xf32, #tpu.memory_space<vmem>>, vector<256x1xf32>
    %cst_12 = arith.constant dense<0.000000e+00> : vector<8x1xf32>
    %14 = tpu.matmul %12, %13, %cst_12 {dimension_numbers = #tpu.dot_dimension_numbers<[1], [0], [0], [1], [0, 0, 1, 1], [], []>} : vector<8x256xf32>, vector<256x1xf32>, vector<8x1xf32> -> vector<8x1xf32>
    %c0_13 = arith.constant 0 : index
    %15 = memref.load %arg7[%c0_13] : memref<1xf32, #tpu.memory_space<smem>>
    %16 = vector.broadcast %15 : f32 to vector<8x1xf32>
    %17 = arith.addf %14, %16 : vector<8x1xf32>
    %c0_14 = arith.constant 0 : index
    %c0_15 = arith.constant 0 : index
    %18 = vector.load %arg8[%c0_14, %c0_15] : memref<8x1xf32, #tpu.memory_space<vmem>>, vector<8x1xf32>
    tpu.vector_store %arg8[%c0_14, %c0_15], %17 {strides = array<i32>} : memref<8x1xf32, #tpu.memory_space<vmem>>, vector<8x1xf32>,
    return
  }
  func.func @transform_0(%arg0: i32) -> (i32, i32) {
    %c0_i32 = arith.constant 0 : i32
    %c0_i32_0 = arith.constant 0 : i32
    return %arg0, %c0_i32 : i32, i32
  }
  func.func @transform_1(%arg0: i32) -> (i32, i32) {
    %c0_i32 = arith.constant 0 : i32
    %c0_i32_0 = arith.constant 0 : i32
    %c0_i32_1 = arith.constant 0 : i32
    return %c0_i32, %c0_i32_0 : i32, i32
  }
  func.func @transform_2(%arg0: i32) -> (i32, i32) {
    %c0_i32 = arith.constant 0 : i32
    %c0_i32_0 = arith.constant 0 : i32
    %c0_i32_1 = arith.constant 0 : i32
    return %c0_i32, %c0_i32_0 : i32, i32
  }
  func.func @transform_3(%arg0: i32) -> (i32, i32) {
    %c0_i32 = arith.constant 0 : i32
    %c0_i32_0 = arith.constant 0 : i32
    %c0_i32_1 = arith.constant 0 : i32
    return %c0_i32, %c0_i32_0 : i32, i32
  }
  func.func @transform_4(%arg0: i32) -> (i32, i32) {
    %c0_i32 = arith.constant 0 : i32
    %c0_i32_0 = arith.constant 0 : i32
    %c0_i32_1 = arith.constant 0 : i32
    return %c0_i32, %c0_i32_0 : i32, i32
  }
  func.func @transform_5(%arg0: i32) -> (i32, i32) {
    %c0_i32 = arith.constant 0 : i32
    %c0_i32_0 = arith.constant 0 : i32
    %c0_i32_1 = arith.constant 0 : i32
    return %c0_i32, %c0_i32_0 : i32, i32
  }
  func.func @transform_6(%arg0: i32) -> i32 {
    %c0_i32 = arith.constant 0 : i32
    %c0_i32_0 = arith.constant 0 : i32
    return %c0_i32 : i32
  }
  func.func @transform_7(%arg0: i32) -> (i32, i32) {
    %c0_i32 = arith.constant 0 : i32
    %c0_i32_0 = arith.constant 0 : i32
    return %arg0, %c0_i32 : i32, i32
  }
}

</mosaic_0001>

<llo_original>
// kernel: critic_forward.1
$region0: #{critic_forward.1}
  #allocation0 [shape = 'u32[]', space=smem, size = 0x4, offset = 0x4, fixed_abs, tag = 'smem constant byte address 0x4 - core index']
  #allocation1 [shape = 'u32[144,128]{1,0:T(1,128)}', space=vmem, size = 0x12000, scoped, tag = 'internal scratch']
  #allocation2 [shape = 'f32[1]{0:T(128)S(6)}', space=smem, size = 0x200, scoped, tag = 'scoped memory for critic_forward.1']
  %s0 = inlined_call_operand.vmem [shape: f32[8,32], index: 0, kind: input, shape index: {}]
  %s1 = inlined_call_operand.vmem [shape: f32[32,256], index: 1, kind: input, shape index: {}]
  %s2 = inlined_call_operand.vmem [shape: f32[1,256], index: 2, kind: input, shape index: {}]
  %s3 = inlined_call_operand.hbm [shape: f32[256,256], index: 3, kind: input, shape index: {}]
  %s4 = inlined_call_operand.vmem [shape: f32[1,256], index: 4, kind: input, shape index: {}]
  %s5 = inlined_call_operand.vmem [shape: f32[256,1], index: 5, kind: input, shape index: {}]
  %s6 = inlined_call_operand.<no memory space> [shape: f32[1], index: 6, kind: input, shape index: {}]
  %s7 = inlined_call_operand.vmem [shape: f32[8,1], index: 7, kind: output, shape index: {}]
  %s8 = sld [smem:[#allocation0]]
  $region42: #{critic_forward.1} parent=0
    _
  %s10 = ssub.s32 1, %s8
  %s11 = scalar_select 0, %s10, %s8
  %12 = sst [smem:[#allocation2]] %s6
  $region1: #{critic_forward.1} parent=0
    #allocation3 [shape = 'u8[262144]{0}', space=vmem, size = 0x40000, scoped, tag = 'input window, operand 3, single buffered']
    #allocation4 [shape = 's32[1]{0}', space=sflag, size = 0x4, scoped, tag = 'scoped memory for critic_forward.1']
    %13 = vsyncpa [#allocation4], 0
    // Predicated region
    $region2: #{critic_forward.1} parent=1 // pred_check
      _
    $region3: #{critic_forward.1} parent=1 // pred_check_branch
      %15 = sbr.rel (0) target = $region5
    $region4: #{critic_forward.1} parent=1 // pred_region
      _
    $region5: #{critic_forward.1} parent=1 // pred_fallthru
      _
    // Predicated region
    $region6: #{critic_forward.1} parent=1 // pred_check
      _
    $region7: #{critic_forward.1} parent=1 // pred_check_branch
      %17 = sbr.rel (0) target = $region9
    $region8: #{critic_forward.1} parent=1 // pred_region
      _
    $region9: #{critic_forward.1} parent=1 // pred_fallthru
      _
    // Predicated region
    $region10: #{critic_forward.1} parent=1 // pred_check
      _
    $region11: #{critic_forward.1} parent=1 // pred_check_branch
      %19 = sbr.rel (0) target = $region13
    $region12: #{critic_forward.1} parent=1 // pred_region
      _
    $region13: #{critic_forward.1} parent=1 // pred_fallthru
      _
    // Predicated region
    $region14: #{critic_forward.1} parent=1 // pred_check
      _
    $region15: #{critic_forward.1} parent=1 // pred_check_branch
      %21 = sbr.rel (0) target = $region17
    $region16: #{critic_forward.1} parent=1 // pred_region
      %s23 = ssub.s32 8192, 8192
      %24 = vsyncadd [#allocation4], %s23
      %s25 = sshll.u32 [#allocation3], 4
      %s26 = int_to_ptr.vmem [resolvable:$true] %s25
      %31 = dma.hbm_to_vmem [thread:$0]  %s3, 8192, %s26, [#allocation4], 256, 256, 16
    $region17: #{critic_forward.1} parent=1 // pred_fallthru
      _
    // Predicated region
    $region18: #{critic_forward.1} parent=1 // pred_check
      _
    $region19: #{critic_forward.1} parent=1 // pred_check_branch
      %33 = sbr.rel (0) target = $region21
    $region20: #{critic_forward.1} parent=1 // pred_region
      _
    $region21: #{critic_forward.1} parent=1 // pred_fallthru
      _
    // Predicated region
    $region22: #{critic_forward.1} parent=1 // pred_check
      _
    $region23: #{critic_forward.1} parent=1 // pred_check_branch
      %35 = sbr.rel (0) target = $region25
    $region24: #{critic_forward.1} parent=1 // pred_region
      _
    $region25: #{critic_forward.1} parent=1 // pred_fallthru
      _
    // Predicated region
    $region26: #{critic_forward.1} parent=1 // pred_check
      _
    $region27: #{critic_forward.1} parent=1 // pred_check_branch
      %37 = sbr.rel (0) target = $region29
    $region28: #{critic_forward.1} parent=1 // pred_region
      _
    $region29: #{critic_forward.1} parent=1 // pred_fallthru
      _
    // Predicated region
    $region30: #{critic_forward.1} parent=1 // pred_check
      _
    $region31: #{critic_forward.1} parent=1 // pred_check_branch
      %39 = sbr.rel (0) target = $region33
    $region32: #{critic_forward.1} parent=1 // pred_region
      %40 = dma.done [#allocation4], 8192
    $region33: #{critic_forward.1} parent=1 // pred_fallthru
      _
    %v41 = vld [vmem:[%s0] sm:$0xff]
    %v42 = vld [vmem:[%s1] sm:$0xff]
    %v43 = vld [vmem:[%s1 + $0x8] sm:$0xff]
    %v44 = vld [vmem:[%s1 + $0x10] sm:$0xff]
    %v45 = vld [vmem:[%s1 + $0x18] sm:$0xff]
    %v46 = vld [vmem:[%s1 + $0x20] sm:$0xff]
    %v47 = vld [vmem:[%s1 + $0x28] sm:$0xff]
    %v48 = vld [vmem:[%s1 + $0x30] sm:$0xff]
    %v49 = vld [vmem:[%s1 + $0x38] sm:$0xff]
    %v50 = vld [vmem:[%s2] sm:$0x3]
    %v52 = vlaneseq
    %v53 = vshrl.u32 %v52, 7
    %v54 = vsub.s32 0, %v53
    %v55 = vrot.slane %v50, %v54
    %v56 = vlaneseq
    %v57 = vshrl.u32 %v56, 7
    %v58 = vsub.s32 1, %v57
    %v59 = vrot.slane %v50, %v58
    %vm62 = vcmask 261120
    %v64 = vsel %vm62, %v41, 0
    %66 = vmatprep.subr.mxu0 0.0
    %67 = vmatpush1.msra.mxu0 0.0
    %68 = vmatprep.subr.mxu0 0.0
    %69 = vmatpush1.msra.mxu0 0.0
    %70 = vmatprep.subr.mxu0 0.0
    %71 = vmatpush1.msra.mxu0 0.0
    %72 = vmatprep.subr.mxu0 0.0
    %73 = vmatpush1.msra.mxu0 0.0
    %74 = vmatprep.subr.mxu0 0.0
    %75 = vmatpush1.msra.mxu0 0.0
    %76 = vmatprep.subr.mxu0 0.0
    %77 = vmatpush1.msra.mxu0 0.0
    %78 = vmatprep.subr.mxu0 0.0
    %79 = vmatpush1.msra.mxu0 0.0
    %80 = vmatprep.subr.mxu0 0.0
    %81 = vmatpush1.msra.mxu0 0.0
    %82 = vmatprep.subr.mxu0 0.0
    %83 = vmatpush1.msra.mxu0 0.0
    %84 = vmatprep.subr.mxu0 0.0
    %85 = vmatpush1.msra.mxu0 0.0
    %86 = vmatprep.subr.mxu0 0.0
    %87 = vmatpush1.msra.mxu0 0.0
    %88 = vmatprep.subr.mxu0 0.0
    %89 = vmatpush1.msra.mxu0 0.0
    %90 = vmatprep.subr.mxu0 %v49
    %91 = vmatpush1.msra.mxu0 %v48
    %92 = vmatprep.subr.mxu0 %v47
    %93 = vmatpush1.msra.mxu0 %v46
    %94 = vmatprep.subr.mxu0 %v45
    %95 = vmatpush1.msra.mxu0 %v44
    %96 = vmatprep.subr.mxu0 %v43
    %97 = vmatpush1.msra.mxu0 %v42
    %98 = vmatprep.subr.mxu0 0.0
    %99 = vmatpush2.msra.mxu0 0.0
    %100 = vmatprep.subr.mxu0 0.0
    %101 = vmatpush2.msra.mxu0 0.0
    %102 = vmatprep.subr.mxu0 0.0
    %103 = vmatpush2.msra.mxu0 0.0
    %104 = vmatprep.subr.mxu0 0.0
    %105 = vmatpush2.msra.mxu0 0.0
    %106 = vmatprep.subr.mxu0 0.0
    %107 = vmatpush2.msra.mxu0 0.0
    %108 = vmatprep.subr.mxu0 0.0
    %109 = vmatpush2.msra.mxu0 0.0
    %110 = vmatprep.subr.mxu0 0.0
    %111 = vmatpush2.msra.mxu0 0.0
    %112 = vmatprep.subr.mxu0 0.0
    %113 = vmatpush2.msra.mxu0 0.0
    %114 = vmatprep.subr.mxu0 0.0
    %115 = vmatpush2.msra.mxu0 0.0
    %116 = vmatprep.subr.mxu0 0.0
    %117 = vmatpush2.msra.mxu0 0.0
    %118 = vmatprep.subr.mxu0 0.0
    %119 = vmatpush2.msra.mxu0 0.0
    %120 = vmatprep.subr.mxu0 0.0
    %121 = vmatpush2.msra.mxu0 0.0
    %122 = vmatprep.subr.mxu0 0.0
    %123 = vmatpush2.msra.mxu0 0.0
    %124 = vmatprep.subr.mxu0 0.0
    %125 = vmatpush2.msra.mxu0 0.0
    %126 = vmatprep.subr.mxu0 0.0
    %127 = vmatpush2.msra.mxu0 0.0
    %128 = vmatprep.subr.mxu0 0.0
    %129 = vmatpush2.msra.mxu0 0.0
    %130 = vmatprep.mubr.f32.mxu0 0.0
    %131 = vmatmul.mubr.f32.gmra.mxu0 %v64
    %v132 = vpop.f32.mrf.mxu0
    %v133 = vadd.f32 %v55, %v132
    %v134 = vpop.f32.mrf.mxu0
    %v135 = vadd.f32 %v59, %v134
    %136 = vdwg.mxu0
    %v137 = vtanh.pop %v133
    %v138 = vtanh.pop %v135
    %v139 = vld [vmem:[#allocation3] sm:$0xff]
    %v140 = vld [vmem:[#allocation3 + $0x8] sm:$0xff]
    %v141 = vld [vmem:[#allocation3 + $0x10] sm:$0xff]
    %v142 = vld [vmem:[#allocation3 + $0x18] sm:$0xff]
    %v143 = vld [vmem:[#allocation3 + $0x20] sm:$0xff]
    %v144 = vld [vmem:[#allocation3 + $0x28] sm:$0xff]
    %v145 = vld [vmem:[#allocation3 + $0x30] sm:$0xff]
    %v146 = vld [vmem:[#allocation3 + $0x38] sm:$0xff]
    %v147 = vld [vmem:[#allocation3 + $0x40] sm:$0xff]
    %v148 = vld [vmem:[#allocation3 + $0x48] sm:$0xff]
    %v149 = vld [vmem:[#allocation3 + $0x50] sm:$0xff]
    %v150 = vld [vmem:[#allocation3 + $0x58] sm:$0xff]
    %v151 = vld [vmem:[#allocation3 + $0x60] sm:$0xff]
    %v152 = vld [vmem:[#allocation3 + $0x68] sm:$0xff]
    %v153 = vld [vmem:[#allocation3 + $0x70] sm:$0xff]
    %v154 = vld [vmem:[#allocation3 + $0x78] sm:$0xff]
    %v155 = vld [vmem:[#allocation3 + $0x80] sm:$0xff]
    %v156 = vld [vmem:[#allocation3 + $0x88] sm:$0xff]
    %v157 = vld [vmem:[#allocation3 + $0x90] sm:$0xff]
    %v158 = vld [vmem:[#allocation3 + $0x98] sm:$0xff]
    %v159 = vld [vmem:[#allocation3 + $0xa0] sm:$0xff]
    %v160 = vld [vmem:[#allocation3 + $0xa8] sm:$0xff]
    %v161 = vld [vmem:[#allocation3 + $0xb0] sm:$0xff]
    %v162 = vld [vmem:[#allocation3 + $0xb8] sm:$0xff]
    %v163 = vld [vmem:[#allocation3 + $0xc0] sm:$0xff]
    %v164 = vld [vmem:[#allocation3 + $0xc8] sm:$0xff]
    %v165 = vld [vmem:[#allocation3 + $0xd0] sm:$0xff]
    %v166 = vld [vmem:[#allocation3 + $0xd8] sm:$0xff]
    %v167 = vld [vmem:[#allocation3 + $0xe0] sm:$0xff]
    %v168 = vld [vmem:[#allocation3 + $0xe8] sm:$0xff]
    %v169 = vld [vmem:[#allocation3 + $0xf0] sm:$0xff]
    %v170 = vld [vmem:[#allocation3 + $0xf8] sm:$0xff]
    %v171 = vld [vmem:[#allocation3 + $0x100] sm:$0xff]
    %v172 = vld [vmem:[#allocation3 + $0x108] sm:$0xff]
    %v173 = vld [vmem:[#allocation3 + $0x110] sm:$0xff]
    %v174 = vld [vmem:[#allocation3 + $0x118] sm:$0xff]
    %v175 = vld [vmem:[#allocation3 + $0x120] sm:$0xff]
    %v176 = vld [vmem:[#allocation3 + $0x128] sm:$0xff]
    %v177 = vld [vmem:[#allocation3 + $0x130] sm:$0xff]
    %v178 = vld [vmem:[#allocation3 + $0x138] sm:$0xff]
    %v179 = vld [vmem:[#allocation3 + $0x140] sm:$0xff]
    %v180 = vld [vmem:[#allocation3 + $0x148] sm:$0xff]
    %v181 = vld [vmem:[#allocation3 + $0x150] sm:$0xff]
    %v182 = vld [vmem:[#allocation3 + $0x158] sm:$0xff]
    %v183 = vld [vmem:[#allocation3 + $0x160] sm:$0xff]
    %v184 = vld [vmem:[#allocation3 + $0x168] sm:$0xff]
    %v185 = vld [vmem:[#allocation3 + $0x170] sm:$0xff]
    %v186 = vld [vmem:[#allocation3 + $0x178] sm:$0xff]
    %v187 = vld [vmem:[#allocation3 + $0x180] sm:$0xff]
    %v188 = vld [vmem:[#allocation3 + $0x188] sm:$0xff]
    %v189 = vld [vmem:[#allocation3 + $0x190] sm:$0xff]
    %v190 = vld [vmem:[#allocation3 + $0x198] sm:$0xff]
    %v191 = vld [vmem:[#allocation3 + $0x1a0] sm:$0xff]
    %v192 = vld [vmem:[#allocation3 + $0x1a8] sm:$0xff]
    %v193 = vld [vmem:[#allocation3 + $0x1b0] sm:$0xff]
    %v194 = vld [vmem:[#allocation3 + $0x1b8] sm:$0xff]
    %v195 = vld [vmem:[#allocation3 + $0x1c0] sm:$0xff]
    %v196 = vld [vmem:[#allocation3 + $0x1c8] sm:$0xff]
    %v197 = vld [vmem:[#allocation3 + $0x1d0] sm:$0xff]
    %v198 = vld [vmem:[#allocation3 + $0x1d8] sm:$0xff]
    %v199 = vld [vmem:[#allocation3 + $0x1e0] sm:$0xff]
    %v200 = vld [vmem:[#allocation3 + $0x1e8] sm:$0xff]
    %v201 = vld [vmem:[#allocation3 + $0x1f0] sm:$0xff]
    %v202 = vld [vmem:[#allocation3 + $0x1f8] sm:$0xff]
    %v203 = vld [vmem:[%s4] sm:$0x3]
    %v205 = vlaneseq
    %v206 = vshrl.u32 %v205, 7
    %v207 = vsub.s32 0, %v206
    %v208 = vrot.slane %v203, %v207
    %v209 = vlaneseq
    %v210 = vshrl.u32 %v209, 7
    %v211 = vsub.s32 1, %v210
    %v212 = vrot.slane %v203, %v211
    %215 = vmatprep.subr.mxu0 %v170
    %216 = vmatpush1.msra.mxu0 %v169
    %217 = vmatprep.subr.mxu0 %v168
    %218 = vmatpush1.msra.mxu0 %v167
    %219 = vmatprep.subr.mxu0 %v166
    %220 = vmatpush1.msra.mxu0 %v165
    %221 = vmatprep.subr.mxu0 %v164
    %222 = vmatpush1.msra.mxu0 %v163
    %223 = vmatprep.subr.mxu0 %v162
    %224 = vmatpush1.msra.mxu0 %v161
    %225 = vmatprep.subr.mxu0 %v160
    %226 = vmatpush1.msra.mxu0 %v159
    %227 = vmatprep.subr.mxu0 %v158
    %228 = vmatpush1.msra.mxu0 %v157
    %229 = vmatprep.subr.mxu0 %v156
    %230 = vmatpush1.msra.mxu0 %v155
    %231 = vmatprep.subr.mxu0 %v154
    %232 = vmatpush1.msra.mxu0 %v153
    %233 = vmatprep.subr.mxu0 %v152
    %234 = vmatpush1.msra.mxu0 %v151
    %235 = vmatprep.subr.mxu0 %v150
    %236 = vmatpush1.msra.mxu0 %v149
    %237 = vmatprep.subr.mxu0 %v148
    %238 = vmatpush1.msra.mxu0 %v147
    %239 = vmatprep.subr.mxu0 %v146
    %240 = vmatpush1.msra.mxu0 %v145
    %241 = vmatprep.subr.mxu0 %v144
    %242 = vmatpush1.msra.mxu0 %v143
    %243 = vmatprep.subr.mxu0 %v142
    %244 = vmatpush1.msra.mxu0 %v141
    %245 = vmatprep.subr.mxu0 %v140
    %246 = vmatpush1.msra.mxu0 %v139
    %247 = vmatprep.subr.mxu0 %v202
    %248 = vmatpush2.msra.mxu0 %v201
    %249 = vmatprep.subr.mxu0 %v200
    %250 = vmatpush2.msra.mxu0 %v199
    %251 = vmatprep.subr.mxu0 %v198
    %252 = vmatpush2.msra.mxu0 %v197
    %253 = vmatprep.subr.mxu0 %v196
    %254 = vmatpush2.msra.mxu0 %v195
    %255 = vmatprep.subr.mxu0 %v194
    %256 = vmatpush2.msra.mxu0 %v193
    %257 = vmatprep.subr.mxu0 %v192
    %258 = vmatpush2.msra.mxu0 %v191
    %259 = vmatprep.subr.mxu0 %v190
    %260 = vmatpush2.msra.mxu0 %v189
    %261 = vmatprep.subr.mxu0 %v188
    %262 = vmatpush2.msra.mxu0 %v187
    %263 = vmatprep.subr.mxu0 %v186
    %264 = vmatpush2.msra.mxu0 %v185
    %265 = vmatprep.subr.mxu0 %v184
    %266 = vmatpush2.msra.mxu0 %v183
    %267 = vmatprep.subr.mxu0 %v182
    %268 = vmatpush2.msra.mxu0 %v181
    %269 = vmatprep.subr.mxu0 %v180
    %270 = vmatpush2.msra.mxu0 %v179
    %271 = vmatprep.subr.mxu0 %v178
    %272 = vmatpush2.msra.mxu0 %v177
    %273 = vmatprep.subr.mxu0 %v176
    %274 = vmatpush2.msra.mxu0 %v175
    %275 = vmatprep.subr.mxu0 %v174
    %276 = vmatpush2.msra.mxu0 %v173
    %277 = vmatprep.subr.mxu0 %v172
    %278 = vmatpush2.msra.mxu0 %v171
    %279 = vmatprep.mubr.f32.mxu0 %v138
    %280 = vmatmul.mubr.f32.gmra.mxu0 %v137
    %v281 = vpop.f32.mrf.mxu0
    %v282 = vadd.f32 %v208, %v281
    %v283 = vpop.f32.mrf.mxu0
    %v284 = vadd.f32 %v212, %v283
    %285 = vdwg.mxu0
    %v286 = vtanh.pop %v282
    %v287 = vtanh.pop %v284
    %v288 = vld [vmem:[%s5] sm:$0xff]
    %v289 = vld [vmem:[%s5 + $0x8] sm:$0xff]
    %v290 = vld [vmem:[%s5 + $0x10] sm:$0xff]
    %v291 = vld [vmem:[%s5 + $0x18] sm:$0xff]
    %v292 = vld [vmem:[%s5 + $0x20] sm:$0xff]
    %v293 = vld [vmem:[%s5 + $0x28] sm:$0xff]
    %v294 = vld [vmem:[%s5 + $0x30] sm:$0xff]
    %v295 = vld [vmem:[%s5 + $0x38] sm:$0xff]
    %v296 = vld [vmem:[%s5 + $0x40] sm:$0xff]
    %v297 = vld [vmem:[%s5 + $0x48] sm:$0xff]
    %v298 = vld [vmem:[%s5 + $0x50] sm:$0xff]
    %v299 = vld [vmem:[%s5 + $0x58] sm:$0xff]
    %v300 = vld [vmem:[%s5 + $0x60] sm:$0xff]
    %v301 = vld [vmem:[%s5 + $0x68] sm:$0xff]
    %v302 = vld [vmem:[%s5 + $0x70] sm:$0xff]
    %v303 = vld [vmem:[%s5 + $0x78] sm:$0xff]
    %v304 = vld [vmem:[%s5 + $0x80] sm:$0xff]
    %v305 = vld [vmem:[%s5 + $0x88] sm:$0xff]
    %v306 = vld [vmem:[%s5 + $0x90] sm:$0xff]
    %v307 = vld [vmem:[%s5 + $0x98] sm:$0xff]
    %v308 = vld [vmem:[%s5 + $0xa0] sm:$0xff]
    %v309 = vld [vmem:[%s5 + $0xa8] sm:$0xff]
    %v310 = vld [vmem:[%s5 + $0xb0] sm:$0xff]
    %v311 = vld [vmem:[%s5 + $0xb8] sm:$0xff]
    %v312 = vld [vmem:[%s5 + $0xc0] sm:$0xff]
    %v313 = vld [vmem:[%s5 + $0xc8] sm:$0xff]
    %v314 = vld [vmem:[%s5 + $0xd0] sm:$0xff]
    %v315 = vld [vmem:[%s5 + $0xd8] sm:$0xff]
    %v316 = vld [vmem:[%s5 + $0xe0] sm:$0xff]
    %v317 = vld [vmem:[%s5 + $0xe8] sm:$0xff]
    %v318 = vld [vmem:[%s5 + $0xf0] sm:$0xff]
    %v319 = vld [vmem:[%s5 + $0xf8] sm:$0xff]
    %s320 = sld [smem:[#allocation2]]
    %v321 = vstv %s320
    %322 = vmatprep.subr.mxu0 0.0
    %323 = vmatpush1.msra.mxu0 %v303
    %324 = vmatprep.subr.mxu0 0.0
    %325 = vmatpush1.msra.mxu0 %v302
    %326 = vmatprep.subr.mxu0 0.0
    %327 = vmatpush1.msra.mxu0 %v301
    %328 = vmatprep.subr.mxu0 0.0
    %329 = vmatpush1.msra.mxu0 %v300
    %330 = vmatprep.subr.mxu0 0.0
    %331 = vmatpush1.msra.mxu0 %v299
    %332 = vmatprep.subr.mxu0 0.0
    %333 = vmatpush1.msra.mxu0 %v298
    %334 = vmatprep.subr.mxu0 0.0
    %335 = vmatpush1.msra.mxu0 %v297
    %336 = vmatprep.subr.mxu0 0.0
    %337 = vmatpush1.msra.mxu0 %v296
    %338 = vmatprep.subr.mxu0 0.0
    %339 = vmatpush1.msra.mxu0 %v295
    %340 = vmatprep.subr.mxu0 0.0
    %341 = vmatpush1.msra.mxu0 %v294
    %342 = vmatprep.subr.mxu0 0.0
    %343 = vmatpush1.msra.mxu0 %v293
    %344 = vmatprep.subr.mxu0 0.0
    %345 = vmatpush1.msra.mxu0 %v292
    %346 = vmatprep.subr.mxu0 0.0
    %347 = vmatpush1.msra.mxu0 %v291
    %348 = vmatprep.subr.mxu0 0.0
    %349 = vmatpush1.msra.mxu0 %v290
    %350 = vmatprep.subr.mxu0 0.0
    %351 = vmatpush1.msra.mxu0 %v289
    %352 = vmatprep.subr.mxu0 0.0
    %353 = vmatpush1.msra.mxu0 %v288
    %354 = vmatprep.subr.mxu0 0.0
    %355 = vmatpush2.msra.mxu0 %v319
    %356 = vmatprep.subr.mxu0 0.0
    %357 = vmatpush2.msra.mxu0 %v318
    %358 = vmatprep.subr.mxu0 0.0
    %359 = vmatpush2.msra.mxu0 %v317
    %360 = vmatprep.subr.mxu0 0.0
    %361 = vmatpush2.msra.mxu0 %v316
    %362 = vmatprep.subr.mxu0 0.0
    %363 = vmatpush2.msra.mxu0 %v315
    %364 = vmatprep.subr.mxu0 0.0
    %365 = vmatpush2.msra.mxu0 %v314
    %366 = vmatprep.subr.mxu0 0.0
    %367 = vmatpush2.msra.mxu0 %v313
    %368 = vmatprep.subr.mxu0 0.0
    %369 = vmatpush2.msra.mxu0 %v312
    %370 = vmatprep.subr.mxu0 0.0
    %371 = vmatpush2.msra.mxu0 %v311
    %372 = vmatprep.subr.mxu0 0.0
    %373 = vmatpush2.msra.mxu0 %v310
    %374 = vmatprep.subr.mxu0 0.0
    %375 = vmatpush2.msra.mxu0 %v309
    %376 = vmatprep.subr.mxu0 0.0
    %377 = vmatpush2.msra.mxu0 %v308
    %378 = vmatprep.subr.mxu0 0.0
    %379 = vmatpush2.msra.mxu0 %v307
    %380 = vmatprep.subr.mxu0 0.0
    %381 = vmatpush2.msra.mxu0 %v306
    %382 = vmatprep.subr.mxu0 0.0
    %383 = vmatpush2.msra.mxu0 %v305
    %384 = vmatprep.subr.mxu0 0.0
    %385 = vmatpush2.msra.mxu0 %v304
    %386 = vmatprep.mubr.f32.mxu0 %v287
    %387 = vmatmul.mubr.f32.gmra.mxu0 %v286
    %v388 = vpop.f32.mrf.mxu0
    %v389 = vadd.f32 %v321, %v388
    %v390 = vpop.f32.mrf.mxu0
    %391 = vdwg.mxu0
    %vm392 = vcmask 7168
    %393 = vst.msk [vmem:[%s7] sm:$0xff] %vm392, %v389
    // Predicated region
    $region34: #{critic_forward.1} parent=1 // pred_check
      _
    $region35: #{critic_forward.1} parent=1 // pred_check_branch
      %395 = sbr.rel (0) target = $region37
    $region36: #{critic_forward.1} parent=1 // pred_region
      _
    $region37: #{critic_forward.1} parent=1 // pred_fallthru
      _
    // Predicated region
    $region38: #{critic_forward.1} parent=1 // pred_check
      _
    $region39: #{critic_forward.1} parent=1 // pred_check_branch
      %397 = sbr.rel (0) target = $region41
    $region40: #{critic_forward.1} parent=1 // pred_region
      _
    $region41: #{critic_forward.1} parent=1 // pred_fallthru
      _
    %398 = vsyncpa [#allocation4], 1

</llo_original>
